<compile_context>
chip_gen: v5e
topology: v5e:2x2
jax: 0.10.0
libtpu: 0.0.40
codegen_flags: <defaults>
</compile_context>

<pallas_src>
import functools

import jax
import jax.numpy as jnp
import numpy as np
from jax import lax
from jax.experimental import pallas as pl
from jax.experimental.pallas import tpu as pltpu

EPS = 1e-5
KH = KW = 3  # conv kernel size


# --------------------------------- kernel ------------------------------------
def _residual_block_kernel(x_ref, t1_ref, t2_ref, ts_ref, shift_ref, o_ref,
                           xbuf_ref, hbuf_ref, *, B, H, Wc_in, Wc_out,
                           add_shortcut, identity_shortcut):
    BH = B * H

    # Zero row-padding for the conv row taps: only the border rows (the
    # interiors are fully overwritten every step; kept per-step, not
    # pl.when(step==0), so it stays correct under megacore grid sharding).
    zx = jnp.zeros((B, 1, Wc_in), jnp.float32)
    xbuf_ref[:, 0:1, :] = zx
    xbuf_ref[:, H + 1:H + 2, :] = zx
    zh = jnp.zeros((B, 1, Wc_out), jnp.float32)
    hbuf_ref[:, 0:1, :] = zh
    hbuf_ref[:, H + 1:H + 2, :] = zh

    x32 = x_ref[...]                                      # (B*H, W*Cin) f32
    xbuf_ref[:, 1:H + 1, :] = x32.reshape(B, H, Wc_in)
    xb = x32.astype(jnp.bfloat16)                         # single cast, reused

    # ---- conv1 (+ folded bn1 scale): 3 row-shifted matmuls, M = B*H ----------
    acc1 = jnp.dot(xb, t1_ref[1], preferred_element_type=jnp.float32)
    for kh in (0, 2):                                     # edge taps from scratch
        lhs = xbuf_ref[:, kh:kh + H, :].reshape(BH, Wc_in).astype(jnp.bfloat16)
        acc1 = acc1 + jnp.dot(lhs, t1_ref[kh],
                              preferred_element_type=jnp.float32)
    h1 = jnp.maximum(acc1 + shift_ref[0], 0.0)            # bn1 shift + relu
    hbuf_ref[:, 1:H + 1, :] = h1.reshape(B, H, Wc_out)

    # ---- conv2 (+ folded bn2 scale) ------------------------------------------
    acc2 = jnp.dot(h1.astype(jnp.bfloat16), t2_ref[1],
                   preferred_element_type=jnp.float32)
    for kh in (0, 2):
        lhs = hbuf_ref[:, kh:kh + H, :].reshape(BH, Wc_out).astype(jnp.bfloat16)
        acc2 = acc2 + jnp.dot(lhs, t2_ref[kh],
                              preferred_element_type=jnp.float32)
    out = acc2 + shift_ref[1]

    # ---- stochastic-depth shortcut (host-side gate => static flag) ----------
    if add_shortcut:
        if identity_shortcut:
            out = out + x32                               # exact f32 residual add
        else:
            sc = jnp.dot(xb, ts_ref[...], preferred_element_type=jnp.float32)
            out = out + sc + shift_ref[2]

    o_ref[...] = jnp.maximum(out, 0.0)                    # lane-dense (B*H, W*Cout)


# ----------------------------- weight packing --------------------------------
def _fold_bn(gamma, beta, mean, var):
    scale = gamma / jnp.sqrt(var + EPS)
    shift = beta - mean * scale
    return scale, shift


def _lane_packed_conv3_weights(w_oihw, W, col_scale):
    """PyTorch (Cout, Cin, 3, 3) -> (3, W*Cin, W*Cout) Toeplitz matmul weights.

    T[kh, wp*Cin+ci, w*Cout+co] = w[co, ci, kh, wp-w+1] inside the 3-tap window,
    zero outside, so  conv_out_rows = sum_kh  x_rows[kh:kh+H] @ T[kh]
    with each row flattened as (w, c) -> w*C + c.  Zero W-padding is encoded by
    omitting out-of-range taps.  The folded-BN per-output-channel scale is
    applied to the output columns here (in f32, before the bf16 cast).
    """
    Cout, Cin, _, _ = w_oihw.shape
    kw = jnp.arange(KW)[:, None, None]
    wp = jnp.arange(W)[None, :, None]
    wo = jnp.arange(W)[None, None, :]
    ind = (wp == wo + kw - 1).astype(jnp.float32)                  # (KW, W, W)
    t = jnp.einsum('kpw,oihk->hpiwo', ind, w_oihw.astype(jnp.float32))
    t = t * col_scale[None, None, None, None, :]
    return t.reshape(KH, W * Cin, W * Cout)


def _lane_packed_conv1_weights(w_oi, W, col_scale):
    """(Cout, Cin) 1x1 weight -> block-diagonal (W*Cin, W*Cout) matmul weight."""
    Cout, Cin = w_oi.shape
    ind = jnp.eye(W, dtype=jnp.float32)
    t = jnp.einsum('pw,oi->piwo', ind, w_oi.astype(jnp.float32))
    t = t * col_scale[None, None, None, :]
    return t.reshape(W * Cin, W * Cout)


# --------------------------------- wrapper -----------------------------------
def residual_block_forward(x_nchw, params, *, add_shortcut=False):
    """Pallas forward. x_nchw: (N, Cin, H, W) f32 -> (N, Cout, H, W) f32."""
    x_nchw = x_nchw.astype(jnp.float32)
    N, Cin, H, W = x_nchw.shape
    Cout = params["w1"].shape[0]
    Wc_in, Wc_out = W * Cin, W * Cout

    # Fold BN into per-channel scale/shift; scales go into the conv weights
    # (f32 fold before bf16 cast), additive shifts go to the kernel.
    g1, b1 = _fold_bn(params["bn1_g"], params["bn1_b"],
                      params["bn1_m"], params["bn1_v"])
    g2, b2 = _fold_bn(params["bn2_g"], params["bn2_b"],
                      params["bn2_m"], params["bn2_v"])
    t1 = _lane_packed_conv3_weights(params["w1"], W, g1).astype(jnp.bfloat16)
    t2 = _lane_packed_conv3_weights(params["w2"], W, g2).astype(jnp.bfloat16)

    has_projection = params.get("ws") is not None
    identity_shortcut = not has_projection
    if has_projection:
        gs, bs = _fold_bn(params["bns_g"], params["bns_b"],
                          params["bns_m"], params["bns_v"])
        ts = _lane_packed_conv1_weights(params["ws"][:, :, 0, 0], W, gs)
        ts = ts.astype(jnp.bfloat16)
    else:
        if Cin != Cout:
            raise ValueError("identity shortcut requires in_channels == out_channels")
        bs = jnp.zeros((Cout,), jnp.float32)
        ts = jnp.zeros((Wc_in, Wc_out), jnp.bfloat16)      # unused (identity path)

    shifts = jnp.stack([jnp.tile(v, W) for v in (b1, b2, bs)], axis=0)
    shifts = shifts.reshape(3, 1, Wc_out).astype(jnp.float32)

    # Lane-packed input: rows = (n, h), lanes = (w, c).  Row padding is done
    # in-kernel, so there is no host-side jnp.pad HBM round trip.
    x_pk = jnp.transpose(x_nchw, (0, 2, 3, 1)).reshape(N * H, Wc_in)

    # Batch tile: B images per grid step so every MXU matmul has M = B*H rows
    # (target ~256).  Per-step VMEM stays well under the 32 MiB scoped default
    # on all generations (including v7x's 64 MiB physical VMEM).
    B = max(1, min(N, max(1, 256 // H)))
    while N % B:
        B -= 1

    kernel = functools.partial(
        _residual_block_kernel, B=B, H=H, Wc_in=Wc_in, Wc_out=Wc_out,
        add_shortcut=add_shortcut, identity_shortcut=identity_shortcut)

    full = lambda n: (0, 0, 0)
    out_packed = pl.pallas_call(
        kernel,
        out_shape=jax.ShapeDtypeStruct((N * H, Wc_out), jnp.float32),
        grid_spec=pltpu.PrefetchScalarGridSpec(
            num_scalar_prefetch=0,
            grid=(N // B,),
            in_specs=[
                pl.BlockSpec((B * H, Wc_in), lambda n: (n, 0)),
                pl.BlockSpec((KH, Wc_in, Wc_out), full),
                pl.BlockSpec((KH, Wc_out, Wc_out), full),
                pl.BlockSpec((Wc_in, Wc_out), lambda n: (0, 0)),
                pl.BlockSpec((3, 1, Wc_out), full),
            ],
            out_specs=pl.BlockSpec((B * H, Wc_out), lambda n: (n, 0)),
            scratch_shapes=[
                pltpu.VMEM((B, H + 2, Wc_in), jnp.float32),
                pltpu.VMEM((B, H + 2, Wc_out), jnp.float32),
            ],
        ),
        compiler_params=pltpu.CompilerParams(
            dimension_semantics=("parallel",)),
    )(x_pk, t1, t2, ts, shifts)

    # (N*H, W*Cout) lane-packed -> (N, Cout, H, W)
    return jnp.transpose(out_packed.reshape(N, H, W, Cout), (0, 3, 1, 2))


# ---------------------------- pure-JAX reference -----------------------------
def reference_forward(x_nchw, params, *, add_shortcut=False):
    x = x_nchw.astype(jnp.float32)

    def conv(inp, w, pad):
        return lax.conv_general_dilated(
            inp, w, window_strides=(1, 1), padding=((pad, pad), (pad, pad)),
            dimension_numbers=("NCHW", "OIHW", "NCHW"))

    def bn(inp, g, b, m, v):
        g, b, m, v = (t[None, :, None, None] for t in (g, b, m, v))
        return (inp - m) / jnp.sqrt(v + EPS) * g + b

    out = jax.nn.relu(bn(conv(x, params["w1"], 1),
                         params["bn1_g"], params["bn1_b"],
                         params["bn1_m"], params["bn1_v"]))
    out = bn(conv(out, params["w2"], 1),
             params["bn2_g"], params["bn2_b"], params["bn2_m"], params["bn2_v"])
    if add_shortcut:
        if params.get("ws") is not None:
            sc = bn(conv(x, params["ws"], 0),
                    params["bns_g"], params["bns_b"],
                    params["bns_m"], params["bns_v"])
        else:
            sc = x
        out = out + sc
    return jax.nn.relu(out)


# ---------------------------------- main -------------------------------------
if __name__ == "__main__":
    H, W = 16, 16
    key = jax.random.PRNGKey(0)

    def make_params(k, Cin, Cout, with_projection):
        ks = jax.random.split(k, 16)
        p = {
            "w1": 0.1 * jax.random.normal(ks[0], (Cout, Cin, 3, 3), jnp.float32),
            "bn1_g": 1.0 + 0.1 * jax.random.normal(ks[1], (Cout,), jnp.float32),
            "bn1_b": 0.1 * jax.random.normal(ks[2], (Cout,), jnp.float32),
            "bn1_m": 0.05 * jax.random.normal(ks[3], (Cout,), jnp.float32),
            "bn1_v": 0.5 + jax.random.uniform(ks[4], (Cout,), jnp.float32),
            "w2": 0.1 * jax.random.normal(ks[5], (Cout, Cout, 3, 3), jnp.float32),
            "bn2_g": 1.0 + 0.1 * jax.random.normal(ks[6], (Cout,), jnp.float32),
            "bn2_b": 0.1 * jax.random.normal(ks[7], (Cout,), jnp.float32),
            "bn2_m": 0.05 * jax.random.normal(ks[8], (Cout,), jnp.float32),
            "bn2_v": 0.5 + jax.random.uniform(ks[9], (Cout,), jnp.float32),
            "ws": None,
        }
        if with_projection:  # Cin != Cout => 1x1 conv + BN shortcut
            p["ws"] = 0.1 * jax.random.normal(ks[10], (Cout, Cin, 1, 1), jnp.float32)
            p["bns_g"] = 1.0 + 0.1 * jax.random.normal(ks[11], (Cout,), jnp.float32)
            p["bns_b"] = 0.1 * jax.random.normal(ks[12], (Cout,), jnp.float32)
            p["bns_m"] = 0.05 * jax.random.normal(ks[13], (Cout,), jnp.float32)
            p["bns_v"] = 0.5 + jax.random.uniform(ks[14], (Cout,), jnp.float32)
        return p

    # (Cin, Cout, projection?): both shortcut flavours of the module.
    configs = [(4, 8, True), (8, 8, False)]

    for idx, (Cin, Cout, with_projection) in enumerate(configs):
        kp, kx = jax.random.split(jax.random.fold_in(key, idx))
        params = make_params(kp, Cin, Cout, with_projection)
        x = jax.random.normal(kx, (2, Cin, H, W), jnp.float32)
        # The `self.training and torch.rand(1) < prob_skip` gate is a host-side
        # scalar; exercise both outcomes (False also covers eval mode).
        for add_shortcut in (False, True):
            out = jax.block_until_ready(
                residual_block_forward(x, params, add_shortcut=add_shortcut))
            ref = reference_forward(x, params, add_shortcut=add_shortcut)
            np.testing.assert_allclose(np.asarray(out), np.asarray(ref),
                                       rtol=2e-2, atol=2e-2)  # bf16 MXU operands

    print("KERNEL_OK")
</pallas_src>

<mosaic_0001>
module attributes {stable_mosaic.version = 11 : i64} {
  func.func @_residual_block_kernel(%arg0: i32, %arg1: memref<32x64xf32, #tpu.memory_space<vmem>>, %arg2: memref<3x64x128xbf16, #tpu.memory_space<vmem>>, %arg3: memref<3x128x128xbf16, #tpu.memory_space<vmem>>, %arg4: memref<64x128xbf16, #tpu.memory_space<vmem>>, %arg5: memref<3x1x128xf32, #tpu.memory_space<vmem>>, %arg6: memref<32x128xf32, #tpu.memory_space<vmem>>, %arg7: memref<2x18x64xf32, #tpu.memory_space<vmem>>, %arg8: memref<2x18x128xf32, #tpu.memory_space<vmem>>) attributes {dimension_semantics = [#tpu.dimension_semantics<parallel>], iteration_bounds = array<i64: 1>, scalar_prefetch = 0 : i64, scratch_operands = 2 : i64, tpu.core_type = #tpu.core_type<tc>, window_params = [{transform_indices = @transform_0, window_bounds = array<i64: 32, 64>}, {pipeline_mode = #tpu.pipeline_mode<synchronous>, transform_indices = @transform_1, window_bounds = array<i64: 3, 64, 128>}, {pipeline_mode = #tpu.pipeline_mode<synchronous>, transform_indices = @transform_2, window_bounds = array<i64: 3, 128, 128>}, {pipeline_mode = #tpu.pipeline_mode<synchronous>, transform_indices = @transform_3, window_bounds = array<i64: 64, 128>}, {pipeline_mode = #tpu.pipeline_mode<synchronous>, transform_indices = @transform_4, window_bounds = array<i64: 3, 1, 128>}, {transform_indices = @transform_5, window_bounds = array<i64: 32, 128>}]} {
    %cst = arith.constant 0.000000e+00 : f32
    %0 = vector.broadcast %cst : f32 to vector<2x1x64xf32>
    %c0 = arith.constant 0 : index
    %c0_0 = arith.constant 0 : index
    %c0_1 = arith.constant 0 : index
    %1 = vector.load %arg7[%c0, %c0_0, %c0_1] : memref<2x18x64xf32, #tpu.memory_space<vmem>>, vector<2x1x64xf32>
    tpu.vector_store %arg7[%c0, %c0_0, %c0_1], %0 {strides = array<i32>} : memref<2x18x64xf32, #tpu.memory_space<vmem>>, vector<2x1x64xf32>,
    %c0_2 = arith.constant 0 : index
    %c17 = arith.constant 17 : index
    %c0_3 = arith.constant 0 : index
    %2 = vector.load %arg7[%c0_2, %c17, %c0_3] : memref<2x18x64xf32, #tpu.memory_space<vmem>>, vector<2x1x64xf32>
    tpu.vector_store %arg7[%c0_2, %c17, %c0_3], %0 {strides = array<i32>} : memref<2x18x64xf32, #tpu.memory_space<vmem>>, vector<2x1x64xf32>,
    %cst_4 = arith.constant 0.000000e+00 : f32
    %3 = vector.broadcast %cst_4 : f32 to vector<2x1x128xf32>
    %c0_5 = arith.constant 0 : index
    %c0_6 = arith.constant 0 : index
    %c0_7 = arith.constant 0 : index
    %4 = vector.load %arg8[%c0_5, %c0_6, %c0_7] : memref<2x18x128xf32, #tpu.memory_space<vmem>>, vector<2x1x128xf32>
    tpu.vector_store %arg8[%c0_5, %c0_6, %c0_7], %3 {strides = array<i32>} : memref<2x18x128xf32, #tpu.memory_space<vmem>>, vector<2x1x128xf32>,
    %c0_8 = arith.constant 0 : index
    %c17_9 = arith.constant 17 : index
    %c0_10 = arith.constant 0 : index
    %5 = vector.load %arg8[%c0_8, %c17_9, %c0_10] : memref<2x18x128xf32, #tpu.memory_space<vmem>>, vector<2x1x128xf32>
    tpu.vector_store %arg8[%c0_8, %c17_9, %c0_10], %3 {strides = array<i32>} : memref<2x18x128xf32, #tpu.memory_space<vmem>>, vector<2x1x128xf32>,
    %c0_11 = arith.constant 0 : index
    %c0_12 = arith.constant 0 : index
    %6 = vector.load %arg1[%c0_11, %c0_12] : memref<32x64xf32, #tpu.memory_space<vmem>>, vector<32x64xf32>
    %7 = vector.shape_cast %6 : vector<32x64xf32> to vector<2x16x64xf32>
    %c0_13 = arith.constant 0 : index
    %c1 = arith.constant 1 : index
    %c0_14 = arith.constant 0 : index
    %8 = vector.load %arg7[%c0_13, %c1, %c0_14] : memref<2x18x64xf32, #tpu.memory_space<vmem>>, vector<2x16x64xf32>
    tpu.vector_store %arg7[%c0_13, %c1, %c0_14], %7 {strides = array<i32>} : memref<2x18x64xf32, #tpu.memory_space<vmem>>, vector<2x16x64xf32>,
    %9 = arith.truncf %6 : vector<32x64xf32> to vector<32x64xbf16>
    %c1_15 = arith.constant 1 : index
    %c0_16 = arith.constant 0 : index
    %c0_17 = arith.constant 0 : index
    %10 = vector.load %arg2[%c1_15, %c0_16, %c0_17] : memref<3x64x128xbf16, #tpu.memory_space<vmem>>, vector<1x64x128xbf16>
    %11 = vector.shape_cast %10 : vector<1x64x128xbf16> to vector<64x128xbf16>
    %cst_18 = arith.constant dense<0.000000e+00> : vector<32x128xf32>
    %12 = tpu.matmul %9, %11, %cst_18 {dimension_numbers = #tpu.dot_dimension_numbers<[1], [0], [0], [1], [0, 0, 1, 1], [], []>} : vector<32x64xbf16>, vector<64x128xbf16>, vector<32x128xf32> -> vector<32x128xf32>
    %c0_19 = arith.constant 0 : index
    %c0_20 = arith.constant 0 : index
    %c0_21 = arith.constant 0 : index
    %13 = vector.load %arg7[%c0_19, %c0_20, %c0_21] : memref<2x18x64xf32, #tpu.memory_space<vmem>>, vector<2x16x64xf32>
    %14 = vector.shape_cast %13 : vector<2x16x64xf32> to vector<32x64xf32>
    %15 = arith.truncf %14 : vector<32x64xf32> to vector<32x64xbf16>
    %c0_22 = arith.constant 0 : index
    %c0_23 = arith.constant 0 : index
    %c0_24 = arith.constant 0 : index
    %16 = vector.load %arg2[%c0_22, %c0_23, %c0_24] : memref<3x64x128xbf16, #tpu.memory_space<vmem>>, vector<1x64x128xbf16>
    %17 = vector.shape_cast %16 : vector<1x64x128xbf16> to vector<64x128xbf16>
    %cst_25 = arith.constant dense<0.000000e+00> : vector<32x128xf32>
    %18 = tpu.matmul %15, %17, %cst_25 {dimension_numbers = #tpu.dot_dimension_numbers<[1], [0], [0], [1], [0, 0, 1, 1], [], []>} : vector<32x64xbf16>, vector<64x128xbf16>, vector<32x128xf32> -> vector<32x128xf32>
    %19 = arith.addf %12, %18 : vector<32x128xf32>
    %c0_26 = arith.constant 0 : index
    %c2 = arith.constant 2 : index
    %c0_27 = arith.constant 0 : index
    %20 = vector.load %arg7[%c0_26, %c2, %c0_27] : memref<2x18x64xf32, #tpu.memory_space<vmem>>, vector<2x16x64xf32>
    %21 = vector.shape_cast %20 : vector<2x16x64xf32> to vector<32x64xf32>
    %22 = arith.truncf %21 : vector<32x64xf32> to vector<32x64xbf16>
    %c2_28 = arith.constant 2 : index
    %c0_29 = arith.constant 0 : index
    %c0_30 = arith.constant 0 : index
    %23 = vector.load %arg2[%c2_28, %c0_29, %c0_30] : memref<3x64x128xbf16, #tpu.memory_space<vmem>>, vector<1x64x128xbf16>
    %24 = vector.shape_cast %23 : vector<1x64x128xbf16> to vector<64x128xbf16>
    %cst_31 = arith.constant dense<0.000000e+00> : vector<32x128xf32>
    %25 = tpu.matmul %22, %24, %cst_31 {dimension_numbers = #tpu.dot_dimension_numbers<[1], [0], [0], [1], [0, 0, 1, 1], [], []>} : vector<32x64xbf16>, vector<64x128xbf16>, vector<32x128xf32> -> vector<32x128xf32>
    %26 = arith.addf %19, %25 : vector<32x128xf32>
    %c0_32 = arith.constant 0 : index
    %c0_33 = arith.constant 0 : index
    %c0_34 = arith.constant 0 : index
    %27 = vector.load %arg5[%c0_32, %c0_33, %c0_34] : memref<3x1x128xf32, #tpu.memory_space<vmem>>, vector<1x1x128xf32>
    %28 = vector.shape_cast %27 : vector<1x1x128xf32> to vector<1x128xf32>
    %29 = vector.broadcast %28 : vector<1x128xf32> to vector<32x128xf32>
    %30 = arith.addf %26, %29 : vector<32x128xf32>
    %cst_35 = arith.constant 0.000000e+00 : f32
    %31 = vector.broadcast %cst_35 : f32 to vector<32x128xf32>
    %32 = arith.maximumf %30, %31 : vector<32x128xf32>
    %33 = vector.shape_cast %32 : vector<32x128xf32> to vector<2x16x128xf32>
    %c0_36 = arith.constant 0 : index
    %c1_37 = arith.constant 1 : index
    %c0_38 = arith.constant 0 : index
    %34 = vector.load %arg8[%c0_36, %c1_37, %c0_38] : memref<2x18x128xf32, #tpu.memory_space<vmem>>, vector<2x16x128xf32>
    tpu.vector_store %arg8[%c0_36, %c1_37, %c0_38], %33 {strides = array<i32>} : memref<2x18x128xf32, #tpu.memory_space<vmem>>, vector<2x16x128xf32>,
    %35 = arith.truncf %32 : vector<32x128xf32> to vector<32x128xbf16>
    %c1_39 = arith.constant 1 : index
    %c0_40 = arith.constant 0 : index
    %c0_41 = arith.constant 0 : index
    %36 = vector.load %arg3[%c1_39, %c0_40, %c0_41] : memref<3x128x128xbf16, #tpu.memory_space<vmem>>, vector<1x128x128xbf16>
    %37 = vector.shape_cast %36 : vector<1x128x128xbf16> to vector<128x128xbf16>
    %cst_42 = arith.constant dense<0.000000e+00> : vector<32x128xf32>
    %38 = tpu.matmul %35, %37, %cst_42 {dimension_numbers = #tpu.dot_dimension_numbers<[1], [0], [0], [1], [0, 0, 1, 1], [], []>} : vector<32x128xbf16>, vector<128x128xbf16>, vector<32x128xf32> -> vector<32x128xf32>
    %c0_43 = arith.constant 0 : index
    %c0_44 = arith.constant 0 : index
    %c0_45 = arith.constant 0 : index
    %39 = vector.load %arg8[%c0_43, %c0_44, %c0_45] : memref<2x18x128xf32, #tpu.memory_space<vmem>>, vector<2x16x128xf32>
    %40 = vector.shape_cast %39 : vector<2x16x128xf32> to vector<32x128xf32>
    %41 = arith.truncf %40 : vector<32x128xf32> to vector<32x128xbf16>
    %c0_46 = arith.constant 0 : index
    %c0_47 = arith.constant 0 : index
    %c0_48 = arith.constant 0 : index
    %42 = vector.load %arg3[%c0_46, %c0_47, %c0_48] : memref<3x128x128xbf16, #tpu.memory_space<vmem>>, vector<1x128x128xbf16>
    %43 = vector.shape_cast %42 : vector<1x128x128xbf16> to vector<128x128xbf16>
    %cst_49 = arith.constant dense<0.000000e+00> : vector<32x128xf32>
    %44 = tpu.matmul %41, %43, %cst_49 {dimension_numbers = #tpu.dot_dimension_numbers<[1], [0], [0], [1], [0, 0, 1, 1], [], []>} : vector<32x128xbf16>, vector<128x128xbf16>, vector<32x128xf32> -> vector<32x128xf32>
    %45 = arith.addf %38, %44 : vector<32x128xf32>
    %c0_50 = arith.constant 0 : index
    %c2_51 = arith.constant 2 : index
    %c0_52 = arith.constant 0 : index
    %46 = vector.load %arg8[%c0_50, %c2_51, %c0_52] : memref<2x18x128xf32, #tpu.memory_space<vmem>>, vector<2x16x128xf32>
    %47 = vector.shape_cast %46 : vector<2x16x128xf32> to vector<32x128xf32>
    %48 = arith.truncf %47 : vector<32x128xf32> to vector<32x128xbf16>
    %c2_53 = arith.constant 2 : index
    %c0_54 = arith.constant 0 : index
    %c0_55 = arith.constant 0 : index
    %49 = vector.load %arg3[%c2_53, %c0_54, %c0_55] : memref<3x128x128xbf16, #tpu.memory_space<vmem>>, vector<1x128x128xbf16>
    %50 = vector.shape_cast %49 : vector<1x128x128xbf16> to vector<128x128xbf16>
    %cst_56 = arith.constant dense<0.000000e+00> : vector<32x128xf32>
    %51 = tpu.matmul %48, %50, %cst_56 {dimension_numbers = #tpu.dot_dimension_numbers<[1], [0], [0], [1], [0, 0, 1, 1], [], []>} : vector<32x128xbf16>, vector<128x128xbf16>, vector<32x128xf32> -> vector<32x128xf32>
    %52 = arith.addf %45, %51 : vector<32x128xf32>
    %c1_57 = arith.constant 1 : index
    %c0_58 = arith.constant 0 : index
    %c0_59 = arith.constant 0 : index
    %53 = vector.load %arg5[%c1_57, %c0_58, %c0_59] : memref<3x1x128xf32, #tpu.memory_space<vmem>>, vector<1x1x128xf32>
    %54 = vector.shape_cast %53 : vector<1x1x128xf32> to vector<1x128xf32>
    %55 = vector.broadcast %54 : vector<1x128xf32> to vector<32x128xf32>
    %56 = arith.addf %52, %55 : vector<32x128xf32>
    %cst_60 = arith.constant 0.000000e+00 : f32
    %57 = vector.broadcast %cst_60 : f32 to vector<32x128xf32>
    %58 = arith.maximumf %56, %57 : vector<32x128xf32>
    %c0_61 = arith.constant 0 : index
    %c0_62 = arith.constant 0 : index
    %59 = vector.load %arg6[%c0_61, %c0_62] : memref<32x128xf32, #tpu.memory_space<vmem>>, vector<32x128xf32>
    tpu.vector_store %arg6[%c0_61, %c0_62], %58 {strides = array<i32>} : memref<32x128xf32, #tpu.memory_space<vmem>>, vector<32x128xf32>,
    return
  }
  func.func @transform_0(%arg0: i32) -> (i32, i32) {
    %c0_i32 = arith.constant 0 : i32
    %c0_i32_0 = arith.constant 0 : i32
    return %arg0, %c0_i32 : i32, i32
  }
  func.func @transform_1(%arg0: i32) -> (i32, i32, i32) {
    %c0_i32 = arith.constant 0 : i32
    %c0_i32_0 = arith.constant 0 : i32
    %c0_i32_1 = arith.constant 0 : i32
    %c0_i32_2 = arith.constant 0 : i32
    return %c0_i32, %c0_i32_0, %c0_i32_1 : i32, i32, i32
  }
  func.func @transform_2(%arg0: i32) -> (i32, i32, i32) {
    %c0_i32 = arith.constant 0 : i32
    %c0_i32_0 = arith.constant 0 : i32
    %c0_i32_1 = arith.constant 0 : i32
    %c0_i32_2 = arith.constant 0 : i32
    return %c0_i32, %c0_i32_0, %c0_i32_1 : i32, i32, i32
  }
  func.func @transform_3(%arg0: i32) -> (i32, i32) {
    %c0_i32 = arith.constant 0 : i32
    %c0_i32_0 = arith.constant 0 : i32
    %c0_i32_1 = arith.constant 0 : i32
    return %c0_i32, %c0_i32_0 : i32, i32
  }
  func.func @transform_4(%arg0: i32) -> (i32, i32, i32) {
    %c0_i32 = arith.constant 0 : i32
    %c0_i32_0 = arith.constant 0 : i32
    %c0_i32_1 = arith.constant 0 : i32
    %c0_i32_2 = arith.constant 0 : i32
    return %c0_i32, %c0_i32_0, %c0_i32_1 : i32, i32, i32
  }
  func.func @transform_5(%arg0: i32) -> (i32, i32) {
    %c0_i32 = arith.constant 0 : i32
    %c0_i32_0 = arith.constant 0 : i32
    return %arg0, %c0_i32 : i32, i32
  }
}

</mosaic_0001>

<llo_original>
// kernel: tpu_custom_call.1
$region0: #{tpu_custom_call.1}
  #allocation0 [shape = 'u32[]', space=smem, size = 0x4, offset = 0x4, fixed_abs, tag = 'smem constant byte address 0x4 - core index']
  #allocation1 [shape = 'u32[72,128]{1,0:T(1,128)}', space=vmem, size = 0x9000, scoped, tag = 'internal scratch']
  #allocation2 [shape = 'f32[2,18,64]{2,1,0:T(8,128)}', space=vmem, size = 0x6000, scoped, tag = 'scratch operand']
  #allocation3 [shape = 'f32[2,18,128]{2,1,0:T(8,128)}', space=vmem, size = 0x6000, scoped, tag = 'scratch operand']
  %s0 = inlined_call_operand.hbm [shape: f32[32,64], index: 0, kind: input, shape index: {}]
  %s1 = inlined_call_operand.hbm [shape: bf16[3,64,128], index: 1, kind: input, shape index: {}]
  %s2 = inlined_call_operand.hbm [shape: bf16[3,128,128], index: 2, kind: input, shape index: {}]
  %s3 = inlined_call_operand.hbm [shape: bf16[64,128], index: 3, kind: input, shape index: {}]
  %s4 = inlined_call_operand.vmem [shape: f32[3,1,128], index: 4, kind: input, shape index: {}]
  %s5 = inlined_call_operand.hbm [shape: f32[32,128], index: 5, kind: output, shape index: {}]
  %s6 = sld [smem:[#allocation0]]
  $region46: #{tpu_custom_call.1} parent=0
    _
  %s8 = ssub.s32 1, %s6
  %s9 = scalar_select 0, %s8, %s6
  $region1: #{tpu_custom_call.1} parent=0
    #allocation4 [shape = 'u8[16384]{0}', space=vmem, size = 0x4000, scoped, tag = 'input window, operand 0, single buffered']
    #allocation5 [shape = 's32[1]{0}', space=sflag, size = 0x4, scoped, tag = 'scoped memory for tpu_custom_call.1']
    #allocation6 [shape = 's32[1]{0}', space=sflag, size = 0x4, scoped, tag = 'scoped memory for tpu_custom_call.1']
    #allocation7 [shape = 'u8[49152]{0}', space=vmem, size = 0xc000, scoped, tag = 'input window, operand 1, single buffered']
    #allocation8 [shape = 's32[1]{0}', space=sflag, size = 0x4, scoped, tag = 'scoped memory for tpu_custom_call.1']
    #allocation9 [shape = 'u8[98304]{0}', space=vmem, size = 0x18000, scoped, tag = 'input window, operand 2, single buffered']
    #allocation10 [shape = 'u8[16384]{0}', space=vmem, size = 0x4000, scoped, tag = 'input window, operand 3, single buffered']
    #allocation11 [shape = 's32[1]{0}', space=sflag, size = 0x4, scoped, tag = 'scoped memory for tpu_custom_call.1']
    #allocation12 [shape = 'u8[16384]{0}', space=vmem, size = 0x4000, scoped, tag = 'output window, operand 0, single buffered']
    %10 = vsyncpa [#allocation5], 0
    %11 = vsyncpa [#allocation8], 0
    %12 = vsyncpa [#allocation11], 0
    %13 = vsyncpa [#allocation6], 0
    // Predicated region
    $region2: #{tpu_custom_call.1} parent=1 // pred_check
      _
    $region3: #{tpu_custom_call.1} parent=1 // pred_check_branch
      %15 = sbr.rel (0) target = $region5
    $region4: #{tpu_custom_call.1} parent=1 // pred_region
      %17 = vsyncadd [#allocation5], 0
      %s18 = sshll.u32 %s0, 4
      %s19 = int_to_ptr.hbm [resolvable:$true] %s18
      %s20 = sshll.u32 [#allocation4], 4
      %s21 = int_to_ptr.vmem [resolvable:$true] %s20
      %26 = dma.hbm_to_vmem [thread:$0]  %s19, 512, %s21, [#allocation5], 128, 128, 8
    $region5: #{tpu_custom_call.1} parent=1 // pred_fallthru
      _
    // Predicated region
    $region6: #{tpu_custom_call.1} parent=1 // pred_check
      _
    $region7: #{tpu_custom_call.1} parent=1 // pred_check_branch
      %28 = sbr.rel (0) target = $region9
    $region8: #{tpu_custom_call.1} parent=1 // pred_region
      %30 = vsyncadd [#allocation8], 0
      %s31 = sshll.u32 %s1, 4
      %s32 = int_to_ptr.hbm [resolvable:$true] %s31
      %s33 = sshll.u32 [#allocation7], 4
      %s34 = int_to_ptr.vmem [resolvable:$true] %s33
      %39 = dma.hbm_to_vmem [thread:$0]  %s32, 1536, %s34, [#allocation8], 64, 64, 4
    $region9: #{tpu_custom_call.1} parent=1 // pred_fallthru
      _
    // Predicated region
    $region10: #{tpu_custom_call.1} parent=1 // pred_check
      _
    $region11: #{tpu_custom_call.1} parent=1 // pred_check_branch
      %41 = sbr.rel (0) target = $region13
    $region12: #{tpu_custom_call.1} parent=1 // pred_region
      %43 = vsyncadd [#allocation8], 0
      %s44 = sshll.u32 %s2, 4
      %s45 = int_to_ptr.hbm [resolvable:$true] %s44
      %s46 = sshll.u32 [#allocation9], 4
      %s47 = int_to_ptr.vmem [resolvable:$true] %s46
      %52 = dma.hbm_to_vmem [thread:$0]  %s45, 3072, %s47, [#allocation8], 64, 64, 4
    $region13: #{tpu_custom_call.1} parent=1 // pred_fallthru
      _
    // Predicated region
    $region14: #{tpu_custom_call.1} parent=1 // pred_check
      _
    $region15: #{tpu_custom_call.1} parent=1 // pred_check_branch
      %54 = sbr.rel (0) target = $region17
    $region16: #{tpu_custom_call.1} parent=1 // pred_region
      %56 = vsyncadd [#allocation11], 0
      %s57 = sshll.u32 %s3, 4
      %s58 = int_to_ptr.hbm [resolvable:$true] %s57
      %s59 = sshll.u32 [#allocation10], 4
      %s60 = int_to_ptr.vmem [resolvable:$true] %s59
      %65 = dma.hbm_to_vmem [thread:$0]  %s58, 512, %s60, [#allocation11], 64, 64, 4
    $region17: #{tpu_custom_call.1} parent=1 // pred_fallthru
      _
    // Predicated region
    $region18: #{tpu_custom_call.1} parent=1 // pred_check
      _
    $region19: #{tpu_custom_call.1} parent=1 // pred_check_branch
      %67 = sbr.rel (0) target = $region21
    $region20: #{tpu_custom_call.1} parent=1 // pred_region
      _
    $region21: #{tpu_custom_call.1} parent=1 // pred_fallthru
      _
    // Predicated region
    $region22: #{tpu_custom_call.1} parent=1 // pred_check
      _
    $region23: #{tpu_custom_call.1} parent=1 // pred_check_branch
      %69 = sbr.rel (0) target = $region25
    $region24: #{tpu_custom_call.1} parent=1 // pred_region
      %71 = dma.done [#allocation5], 512
    $region25: #{tpu_custom_call.1} parent=1 // pred_fallthru
      _
    // Predicated region
    $region26: #{tpu_custom_call.1} parent=1 // pred_check
      _
    $region27: #{tpu_custom_call.1} parent=1 // pred_check_branch
      %73 = sbr.rel (0) target = $region29
    $region28: #{tpu_custom_call.1} parent=1 // pred_region
      %75 = dma.done [#allocation8], 1536
    $region29: #{tpu_custom_call.1} parent=1 // pred_fallthru
      _
    // Predicated region
    $region30: #{tpu_custom_call.1} parent=1 // pred_check
      _
    $region31: #{tpu_custom_call.1} parent=1 // pred_check_branch
      %77 = sbr.rel (0) target = $region33
    $region32: #{tpu_custom_call.1} parent=1 // pred_region
      %79 = dma.done [#allocation8], 3072
    $region33: #{tpu_custom_call.1} parent=1 // pred_fallthru
      _
    // Predicated region
    $region34: #{tpu_custom_call.1} parent=1 // pred_check
      _
    $region35: #{tpu_custom_call.1} parent=1 // pred_check_branch
      %81 = sbr.rel (0) target = $region37
    $region36: #{tpu_custom_call.1} parent=1 // pred_region
      %83 = dma.done [#allocation11], 512
    $region37: #{tpu_custom_call.1} parent=1 // pred_fallthru
      _
    %vm85 = vcmask 516096
    %86 = vst.msk [vmem:[#allocation2] sm:$0x1] %vm85, 0.0
    %87 = vst.msk [vmem:[#allocation2 + $0x18] sm:$0x1] %vm85, 0.0
    %88 = vst.msk [vmem:[#allocation2 + $0x11] sm:$0x1] %vm85, 0.0
    %89 = vst.msk [vmem:[#allocation2 + $0x29] sm:$0x1] %vm85, 0.0
    %90 = vst [vmem:[#allocation3] sm:$0x1] 0.0
    %91 = vst [vmem:[#allocation3 + $0x18] sm:$0x1] 0.0
    %92 = vst [vmem:[#allocation3 + $0x11] sm:$0x1] 0.0
    %93 = vst [vmem:[#allocation3 + $0x29] sm:$0x1] 0.0
    %v94 = vld [vmem:[#allocation4] sm:$0xff]
    %v95 = vld [vmem:[#allocation4 + $0x8] sm:$0xff]
    %v96 = vld [vmem:[#allocation4 + $0x10] sm:$0xff]
    %v97 = vld [vmem:[#allocation4 + $0x18] sm:$0xff]
    %vm98 = vcmask 523264
    %99 = vst.msk [vmem:[#allocation2 + $0x1] sm:$0xff] %vm98, %v94
    %100 = vst.msk [vmem:[#allocation2 + $0x9] sm:$0xff] %vm98, %v95
    %101 = vst.msk [vmem:[#allocation2 + $0x19] sm:$0xff] %vm98, %v96
    %102 = vst.msk [vmem:[#allocation2 + $0x21] sm:$0xff] %vm98, %v97
    %v103 = vpack.c.bf16 %v95, %v94
    %v104 = vpack.c.bf16 %v97, %v96
    %s105 = scalar_lea.vmem [#allocation7], 32
    %v106 = vld [vmem:[%s105] sm:$0xf]
    %v107 = vld [vmem:[%s105 + $0x4] sm:$0xf]
    %v108 = vld [vmem:[%s105 + $0x8] sm:$0xf]
    %v109 = vld [vmem:[%s105 + $0xc] sm:$0xf]
    %v110 = vld [vmem:[%s105 + $0x10] sm:$0xf]
    %v111 = vld [vmem:[%s105 + $0x14] sm:$0xf]
    %v112 = vld [vmem:[%s105 + $0x18] sm:$0xf]
    %v113 = vld [vmem:[%s105 + $0x1c] sm:$0xf]
    %v114 = vld [vmem:[#allocation2] sm:$0xff]
    %v115 = vld [vmem:[#allocation2 + $0x8] sm:$0xff]
    %v116 = vld [vmem:[#allocation2 + $0x18] sm:$0xff]
    %v117 = vld [vmem:[#allocation2 + $0x20] sm:$0xff]
    %v118 = vpack.c.bf16 %v115, %v114
    %v119 = vpack.c.bf16 %v117, %v116
    %v120 = vld [vmem:[#allocation7] sm:$0xf]
    %v121 = vld [vmem:[#allocation7 + $0x4] sm:$0xf]
    %v122 = vld [vmem:[#allocation7 + $0x8] sm:$0xf]
    %v123 = vld [vmem:[#allocation7 + $0xc] sm:$0xf]
    %v124 = vld [vmem:[#allocation7 + $0x10] sm:$0xf]
    %v125 = vld [vmem:[#allocation7 + $0x14] sm:$0xf]
    %v126 = vld [vmem:[#allocation7 + $0x18] sm:$0xf]
    %v127 = vld [vmem:[#allocation7 + $0x1c] sm:$0xf]
    %v136 = vunpack.c.l.b16 %v120
    %v137 = vunpack.c.l.b16 %v121
    %v138 = vunpack.c.l.b16 %v122
    %v139 = vunpack.c.l.b16 %v123
    %v140 = vunpack.c.l.b16 %v124
    %v141 = vunpack.c.l.b16 %v125
    %v142 = vunpack.c.l.b16 %v126
    %v143 = vunpack.c.l.b16 %v127
    %v144 = vpack.c.b16 %v137, %v136
    %v145 = vpack.c.b16 %v139, %v138
    %v146 = vpack.c.b16 %v141, %v140
    %v147 = vpack.c.b16 %v143, %v142
    %v153 = vsel %vm98, %v118, 0
    %v156 = vsel %vm98, %v119, 0
    %158 = vmatpush.bf16.msra.mxu0 0
    %159 = vmatpush.bf16.msra.mxu0 0
    %160 = vmatpush.bf16.msra.mxu0 0
    %161 = vmatpush.bf16.msra.mxu0 0
    %162 = vmatpush.bf16.msra.mxu0 %v147
    %163 = vmatpush.bf16.msra.mxu0 %v146
    %164 = vmatpush.bf16.msra.mxu0 %v145
    %165 = vmatpush.bf16.msra.mxu0 %v144
    %166 = vmatmul.bf16.gmra.mxu0 %v153
    %v167 = vpop.f32.mrf.mxu0
    %v168 = vadd.f32 0.0, %v167
    %v169 = vpop.f32.mrf.mxu0
    %v170 = vadd.f32 0.0, %v169
    %171 = vmatmul.bf16.gmra.mxu0 %v156
    %v172 = vpop.f32.mrf.mxu0
    %v173 = vadd.f32 0.0, %v172
    %v174 = vpop.f32.mrf.mxu0
    %v175 = vadd.f32 0.0, %v174
    %176 = vdwg.mxu0
    %v185 = vunpack.c.l.b16 %v106
    %v186 = vunpack.c.l.b16 %v107
    %v187 = vunpack.c.l.b16 %v108
    %v188 = vunpack.c.l.b16 %v109
    %v189 = vunpack.c.l.b16 %v110
    %v190 = vunpack.c.l.b16 %v111
    %v191 = vunpack.c.l.b16 %v112
    %v192 = vunpack.c.l.b16 %v113
    %v193 = vpack.c.b16 %v186, %v185
    %v194 = vpack.c.b16 %v188, %v187
    %v195 = vpack.c.b16 %v190, %v189
    %v196 = vpack.c.b16 %v192, %v191
    %v202 = vsel %vm98, %v103, 0
    %v205 = vsel %vm98, %v104, 0
    %207 = vmatpush.bf16.msra.mxu0 0
    %208 = vmatpush.bf16.msra.mxu0 0
    %209 = vmatpush.bf16.msra.mxu0 0
    %210 = vmatpush.bf16.msra.mxu0 0
    %211 = vmatpush.bf16.msra.mxu0 %v196
    %212 = vmatpush.bf16.msra.mxu0 %v195
    %213 = vmatpush.bf16.msra.mxu0 %v194
    %214 = vmatpush.bf16.msra.mxu0 %v193
    %215 = vmatmul.bf16.gmra.mxu0 %v202
    %v216 = vpop.f32.mrf.mxu0
    %v217 = vadd.f32 %v168, %v216
    %v218 = vpop.f32.mrf.mxu0
    %v219 = vadd.f32 %v170, %v218
    %220 = vmatmul.bf16.gmra.mxu0 %v205
    %v221 = vpop.f32.mrf.mxu0
    %v222 = vadd.f32 %v173, %v221
    %v223 = vpop.f32.mrf.mxu0
    %v224 = vadd.f32 %v175, %v223
    %225 = vdwg.mxu0
    %v226 = vld [vmem:[#allocation2 + $0x2] sm:$0xff]
    %v227 = vld [vmem:[#allocation2 + $0xa] sm:$0xff]
    %v228 = vld [vmem:[#allocation2 + $0x1a] sm:$0xff]
    %v229 = vld [vmem:[#allocation2 + $0x22] sm:$0xff]
    %v230 = vpack.c.bf16 %v227, %v226
    %v231 = vpack.c.bf16 %v229, %v228
    %s232 = scalar_lea.vmem [#allocation7], 64
    %v233 = vld [vmem:[%s232] sm:$0xf]
    %v234 = vld [vmem:[%s232 + $0x4] sm:$0xf]
    %v235 = vld [vmem:[%s232 + $0x8] sm:$0xf]
    %v236 = vld [vmem:[%s232 + $0xc] sm:$0xf]
    %v237 = vld [vmem:[%s232 + $0x10] sm:$0xf]
    %v238 = vld [vmem:[%s232 + $0x14] sm:$0xf]
    %v239 = vld [vmem:[%s232 + $0x18] sm:$0xf]
    %v240 = vld [vmem:[%s232 + $0x1c] sm:$0xf]
    %v249 = vunpack.c.l.b16 %v233
    %v250 = vunpack.c.l.b16 %v234
    %v251 = vunpack.c.l.b16 %v235
    %v252 = vunpack.c.l.b16 %v236
    %v253 = vunpack.c.l.b16 %v237
    %v254 = vunpack.c.l.b16 %v238
    %v255 = vunpack.c.l.b16 %v239
    %v256 = vunpack.c.l.b16 %v240
    %v257 = vpack.c.b16 %v250, %v249
    %v258 = vpack.c.b16 %v252, %v251
    %v259 = vpack.c.b16 %v254, %v253
    %v260 = vpack.c.b16 %v256, %v255
    %v266 = vsel %vm98, %v230, 0
    %v269 = vsel %vm98, %v231, 0
    %271 = vmatpush.bf16.msra.mxu0 0
    %272 = vmatpush.bf16.msra.mxu0 0
    %273 = vmatpush.bf16.msra.mxu0 0
    %274 = vmatpush.bf16.msra.mxu0 0
    %275 = vmatpush.bf16.msra.mxu0 %v260
    %276 = vmatpush.bf16.msra.mxu0 %v259
    %277 = vmatpush.bf16.msra.mxu0 %v258
    %278 = vmatpush.bf16.msra.mxu0 %v257
    %279 = vmatmul.bf16.gmra.mxu0 %v266
    %v280 = vpop.f32.mrf.mxu0
    %v281 = vadd.f32 0.0, %v280
    %v282 = vpop.f32.mrf.mxu0
    %v283 = vadd.f32 0.0, %v282
    %284 = vmatmul.bf16.gmra.mxu0 %v269
    %v285 = vpop.f32.mrf.mxu0
    %v286 = vadd.f32 0.0, %v285
    %v287 = vpop.f32.mrf.mxu0
    %v288 = vadd.f32 0.0, %v287
    %289 = vdwg.mxu0
    %v290 = vadd.f32 %v217, %v281
    %v291 = vadd.f32 %v219, %v283
    %v292 = vadd.f32 %v222, %v286
    %v293 = vadd.f32 %v224, %v288
    %v294 = vld [vmem:[%s4] sm:$0x1]
    %v296 = vperm.slane %v294, 0
    %v298 = vadd.f32 %v290, %v296
    %v299 = vadd.f32 %v291, %v296
    %v300 = vadd.f32 %v292, %v296
    %v301 = vadd.f32 %v293, %v296
    %v302 = vmax.f32 %v298, 0.0
    %v303 = vmax.f32 %v299, 0.0
    %v304 = vmax.f32 %v300, 0.0
    %v305 = vmax.f32 %v301, 0.0
    %306 = vst [vmem:[#allocation3 + $0x1] sm:$0xff] %v302
    %307 = vst [vmem:[#allocation3 + $0x9] sm:$0xff] %v303
    %308 = vst [vmem:[#allocation3 + $0x19] sm:$0xff] %v304
    %309 = vst [vmem:[#allocation3 + $0x21] sm:$0xff] %v305
    %v310 = vpack.c.bf16 %v303, %v302
    %v311 = vpack.c.bf16 %v305, %v304
    %s312 = scalar_lea.vmem [#allocation9], 64
    %v313 = vld [vmem:[%s312] sm:$0xf]
    %v314 = vld [vmem:[%s312 + $0x4] sm:$0xf]
    %v315 = vld [vmem:[%s312 + $0x8] sm:$0xf]
    %v316 = vld [vmem:[%s312 + $0xc] sm:$0xf]
    %v317 = vld [vmem:[%s312 + $0x10] sm:$0xf]
    %v318 = vld [vmem:[%s312 + $0x14] sm:$0xf]
    %v319 = vld [vmem:[%s312 + $0x18] sm:$0xf]
    %v320 = vld [vmem:[%s312 + $0x1c] sm:$0xf]
    %v321 = vld [vmem:[%s312 + $0x20] sm:$0xf]
    %v322 = vld [vmem:[%s312 + $0x24] sm:$0xf]
    %v323 = vld [vmem:[%s312 + $0x28] sm:$0xf]
    %v324 = vld [vmem:[%s312 + $0x2c] sm:$0xf]
    %v325 = vld [vmem:[%s312 + $0x30] sm:$0xf]
    %v326 = vld [vmem:[%s312 + $0x34] sm:$0xf]
    %v327 = vld [vmem:[%s312 + $0x38] sm:$0xf]
    %v328 = vld [vmem:[%s312 + $0x3c] sm:$0xf]
    %v329 = vld [vmem:[#allocation3] sm:$0xff]
    %v330 = vld [vmem:[#allocation3 + $0x8] sm:$0xff]
    %v331 = vld [vmem:[#allocation3 + $0x18] sm:$0xff]
    %v332 = vld [vmem:[#allocation3 + $0x20] sm:$0xff]
    %v333 = vpack.c.bf16 %v330, %v329
    %v334 = vpack.c.bf16 %v332, %v331
    %v335 = vld [vmem:[#allocation9] sm:$0xf]
    %v336 = vld [vmem:[#allocation9 + $0x4] sm:$0xf]
    %v337 = vld [vmem:[#allocation9 + $0x8] sm:$0xf]
    %v338 = vld [vmem:[#allocation9 + $0xc] sm:$0xf]
    %v339 = vld [vmem:[#allocation9 + $0x10] sm:$0xf]
    %v340 = vld [vmem:[#allocation9 + $0x14] sm:$0xf]
    %v341 = vld [vmem:[#allocation9 + $0x18] sm:$0xf]
    %v342 = vld [vmem:[#allocation9 + $0x1c] sm:$0xf]
    %v343 = vld [vmem:[#allocation9 + $0x20] sm:$0xf]
    %v344 = vld [vmem:[#allocation9 + $0x24] sm:$0xf]
    %v345 = vld [vmem:[#allocation9 + $0x28] sm:$0xf]
    %v346 = vld [vmem:[#allocation9 + $0x2c] sm:$0xf]
    %v347 = vld [vmem:[#allocation9 + $0x30] sm:$0xf]
    %v348 = vld [vmem:[#allocation9 + $0x34] sm:$0xf]
    %v349 = vld [vmem:[#allocation9 + $0x38] sm:$0xf]
    %v350 = vld [vmem:[#allocation9 + $0x3c] sm:$0xf]
    %v367 = vunpack.c.l.b16 %v335
    %v368 = vunpack.c.l.b16 %v336
    %v369 = vunpack.c.l.b16 %v337
    %v370 = vunpack.c.l.b16 %v338
    %v371 = vunpack.c.l.b16 %v339
    %v372 = vunpack.c.l.b16 %v340
    %v373 = vunpack.c.l.b16 %v341
    %v374 = vunpack.c.l.b16 %v342
    %v375 = vunpack.c.l.b16 %v343
    %v376 = vunpack.c.l.b16 %v344
    %v377 = vunpack.c.l.b16 %v345
    %v378 = vunpack.c.l.b16 %v346
    %v379 = vunpack.c.l.b16 %v347
    %v380 = vunpack.c.l.b16 %v348
    %v381 = vunpack.c.l.b16 %v349
    %v382 = vunpack.c.l.b16 %v350
    %v383 = vpack.c.b16 %v368, %v367
    %v384 = vpack.c.b16 %v370, %v369
    %v385 = vpack.c.b16 %v372, %v371
    %v386 = vpack.c.b16 %v374, %v373
    %v387 = vpack.c.b16 %v376, %v375
    %v388 = vpack.c.b16 %v378, %v377
    %v389 = vpack.c.b16 %v380, %v379
    %v390 = vpack.c.b16 %v382, %v381
    %399 = vmatpush.bf16.msra.mxu0 %v390
    %400 = vmatpush.bf16.msra.mxu0 %v389
    %401 = vmatpush.bf16.msra.mxu0 %v388
    %402 = vmatpush.bf16.msra.mxu0 %v387
    %403 = vmatpush.bf16.msra.mxu0 %v386
    %404 = vmatpush.bf16.msra.mxu0 %v385
    %405 = vmatpush.bf16.msra.mxu0 %v384
    %406 = vmatpush.bf16.msra.mxu0 %v383
    %407 = vmatmul.bf16.gmra.mxu0 %v333
    %v408 = vpop.f32.mrf.mxu0
    %v409 = vadd.f32 0.0, %v408
    %v410 = vpop.f32.mrf.mxu0
    %v411 = vadd.f32 0.0, %v410
    %412 = vmatmul.bf16.gmra.mxu0 %v334
    %v413 = vpop.f32.mrf.mxu0
    %v414 = vadd.f32 0.0, %v413
    %v415 = vpop.f32.mrf.mxu0
    %v416 = vadd.f32 0.0, %v415
    %417 = vdwg.mxu0
    %v434 = vunpack.c.l.b16 %v313
    %v435 = vunpack.c.l.b16 %v314
    %v436 = vunpack.c.l.b16 %v315
    %v437 = vunpack.c.l.b16 %v316
    %v438 = vunpack.c.l.b16 %v317
    %v439 = vunpack.c.l.b16 %v318
    %v440 = vunpack.c.l.b16 %v319
    %v441 = vunpack.c.l.b16 %v320
    %v442 = vunpack.c.l.b16 %v321
    %v443 = vunpack.c.l.b16 %v322
    %v444 = vunpack.c.l.b16 %v323
    %v445 = vunpack.c.l.b16 %v324
    %v446 = vunpack.c.l.b16 %v325
    %v447 = vunpack.c.l.b16 %v326
    %v448 = vunpack.c.l.b16 %v327
    %v449 = vunpack.c.l.b16 %v328
    %v450 = vpack.c.b16 %v435, %v434
    %v451 = vpack.c.b16 %v437, %v436
    %v452 = vpack.c.b16 %v439, %v438
    %v453 = vpack.c.b16 %v441, %v440
    %v454 = vpack.c.b16 %v443, %v442
    %v455 = vpack.c.b16 %v445, %v444
    %v456 = vpack.c.b16 %v447, %v446
    %v457 = vpack.c.b16 %v449, %v448
    %466 = vmatpush.bf16.msra.mxu0 %v457
    %467 = vmatpush.bf16.msra.mxu0 %v456
    %468 = vmatpush.bf16.msra.mxu0 %v455
    %469 = vmatpush.bf16.msra.mxu0 %v454
    %470 = vmatpush.bf16.msra.mxu0 %v453
    %471 = vmatpush.bf16.msra.mxu0 %v452
    %472 = vmatpush.bf16.msra.mxu0 %v451
    %473 = vmatpush.bf16.msra.mxu0 %v450
    %474 = vmatmul.bf16.gmra.mxu0 %v310
    %v475 = vpop.f32.mrf.mxu0
    %v476 = vadd.f32 %v409, %v475
    %v477 = vpop.f32.mrf.mxu0
    %v478 = vadd.f32 %v411, %v477
    %479 = vmatmul.bf16.gmra.mxu0 %v311
    %v480 = vpop.f32.mrf.mxu0
    %v481 = vadd.f32 %v414, %v480
    %v482 = vpop.f32.mrf.mxu0
    %v483 = vadd.f32 %v416, %v482
    %484 = vdwg.mxu0
    %v485 = vld [vmem:[#allocation3 + $0x2] sm:$0xff]
    %v486 = vld [vmem:[#allocation3 + $0xa] sm:$0xff]
    %v487 = vld [vmem:[#allocation3 + $0x1a] sm:$0xff]
    %v488 = vld [vmem:[#allocation3 + $0x22] sm:$0xff]
    %v489 = vpack.c.bf16 %v486, %v485
    %v490 = vpack.c.bf16 %v488, %v487
    %s491 = scalar_lea.vmem [#allocation9], 128
    %v492 = vld [vmem:[%s491] sm:$0xf]
    %v493 = vld [vmem:[%s491 + $0x4] sm:$0xf]
    %v494 = vld [vmem:[%s491 + $0x8] sm:$0xf]
    %v495 = vld [vmem:[%s491 + $0xc] sm:$0xf]
    %v496 = vld [vmem:[%s491 + $0x10] sm:$0xf]
    %v497 = vld [vmem:[%s491 + $0x14] sm:$0xf]
    %v498 = vld [vmem:[%s491 + $0x18] sm:$0xf]
    %v499 = vld [vmem:[%s491 + $0x1c] sm:$0xf]
    %v500 = vld [vmem:[%s491 + $0x20] sm:$0xf]
    %v501 = vld [vmem:[%s491 + $0x24] sm:$0xf]
    %v502 = vld [vmem:[%s491 + $0x28] sm:$0xf]
    %v503 = vld [vmem:[%s491 + $0x2c] sm:$0xf]
    %v504 = vld [vmem:[%s491 + $0x30] sm:$0xf]
    %v505 = vld [vmem:[%s491 + $0x34] sm:$0xf]
    %v506 = vld [vmem:[%s491 + $0x38] sm:$0xf]
    %v507 = vld [vmem:[%s491 + $0x3c] sm:$0xf]
    %v524 = vunpack.c.l.b16 %v492
    %v525 = vunpack.c.l.b16 %v493
    %v526 = vunpack.c.l.b16 %v494
    %v527 = vunpack.c.l.b16 %v495
    %v528 = vunpack.c.l.b16 %v496
    %v529 = vunpack.c.l.b16 %v497
    %v530 = vunpack.c.l.b16 %v498
    %v531 = vunpack.c.l.b16 %v499
    %v532 = vunpack.c.l.b16 %v500
    %v533 = vunpack.c.l.b16 %v501
    %v534 = vunpack.c.l.b16 %v502
    %v535 = vunpack.c.l.b16 %v503
    %v536 = vunpack.c.l.b16 %v504
    %v537 = vunpack.c.l.b16 %v505
    %v538 = vunpack.c.l.b16 %v506
    %v539 = vunpack.c.l.b16 %v507
    %v540 = vpack.c.b16 %v525, %v524
    %v541 = vpack.c.b16 %v527, %v526
    %v542 = vpack.c.b16 %v529, %v528
    %v543 = vpack.c.b16 %v531, %v530
    %v544 = vpack.c.b16 %v533, %v532
    %v545 = vpack.c.b16 %v535, %v534
    %v546 = vpack.c.b16 %v537, %v536
    %v547 = vpack.c.b16 %v539, %v538
    %556 = vmatpush.bf16.msra.mxu0 %v547
    %557 = vmatpush.bf16.msra.mxu0 %v546
    %558 = vmatpush.bf16.msra.mxu0 %v545
    %559 = vmatpush.bf16.msra.mxu0 %v544
    %560 = vmatpush.bf16.msra.mxu0 %v543
    %561 = vmatpush.bf16.msra.mxu0 %v542
    %562 = vmatpush.bf16.msra.mxu0 %v541
    %563 = vmatpush.bf16.msra.mxu0 %v540
    %564 = vmatmul.bf16.gmra.mxu0 %v489
    %v565 = vpop.f32.mrf.mxu0
    %v566 = vadd.f32 0.0, %v565
    %v567 = vpop.f32.mrf.mxu0
    %v568 = vadd.f32 0.0, %v567
    %569 = vmatmul.bf16.gmra.mxu0 %v490
    %v570 = vpop.f32.mrf.mxu0
    %v571 = vadd.f32 0.0, %v570
    %v572 = vpop.f32.mrf.mxu0
    %v573 = vadd.f32 0.0, %v572
    %574 = vdwg.mxu0
    %v575 = vadd.f32 %v476, %v566
    %v576 = vadd.f32 %v478, %v568
    %v577 = vadd.f32 %v481, %v571
    %v578 = vadd.f32 %v483, %v573
    %s579 = scalar_lea.vmem %s4, 1
    %v580 = vld [vmem:[%s579] sm:$0x1]
    %v582 = vperm.slane %v580, 0
    %v584 = vadd.f32 %v575, %v582
    %v585 = vadd.f32 %v576, %v582
    %v586 = vadd.f32 %v577, %v582
    %v587 = vadd.f32 %v578, %v582
    %v588 = vmax.f32 %v584, 0.0
    %v589 = vmax.f32 %v585, 0.0
    %v590 = vmax.f32 %v586, 0.0
    %v591 = vmax.f32 %v587, 0.0
    %592 = vst [vmem:[#allocation12] sm:$0xff] %v588
    %593 = vst [vmem:[#allocation12 + $0x8] sm:$0xff] %v589
    %594 = vst [vmem:[#allocation12 + $0x10] sm:$0xff] %v590
    %595 = vst [vmem:[#allocation12 + $0x18] sm:$0xff] %v591
    // Predicated region
    $region38: #{tpu_custom_call.1} parent=1 // pred_check
      _
    $region39: #{tpu_custom_call.1} parent=1 // pred_check_branch
      %597 = sbr.rel (0) target = $region41
    $region40: #{tpu_custom_call.1} parent=1 // pred_region
      %599 = vsyncadd [#allocation6], 0
      %s600 = sshll.u32 [#allocation12], 4
      %s601 = int_to_ptr.vmem [resolvable:$true] %s600
      %s602 = sshll.u32 %s5, 4
      %s603 = int_to_ptr.hbm [resolvable:$true] %s602
      %608 = dma.vmem_to_hbm [thread:$0]  %s601, 512, %s603, [#allocation6], 128, 128, 8
    $region41: #{tpu_custom_call.1} parent=1 // pred_fallthru
      _
    // Predicated region
    $region42: #{tpu_custom_call.1} parent=1 // pred_check
      _
    $region43: #{tpu_custom_call.1} parent=1 // pred_check_branch
      %610 = sbr.rel (0) target = $region45
    $region44: #{tpu_custom_call.1} parent=1 // pred_region
      %612 = dma.done [#allocation6], 512
    $region45: #{tpu_custom_call.1} parent=1 // pred_fallthru
      _
    %613 = vsyncpa [#allocation5], 1
    %614 = vsyncpa [#allocation8], 1
    %615 = vsyncpa [#allocation11], 1
    %616 = vsyncpa [#allocation6], 1

</llo_original>
